<compile_context>
chip_gen: v5e
topology: v5e:2x2
jax: 0.10.0
libtpu: 0.0.40
codegen_flags: <defaults>
</compile_context>

<pallas_src>
import functools
import math

import jax
import jax.numpy as jnp
from jax import lax
from jax.experimental import pallas as pl
from jax.experimental.pallas import tpu as pltpu


LANE = 128  # TPU vreg lane width; feature dims are padded to multiples of this.


def _round_up(x: int, m: int) -> int:
    return ((x + m - 1) // m) * m


def _tpu_generation():
    """Heuristic (parallel TensorCores per device, physical VMEM bytes)."""
    kind = ""
    try:
        kind = jax.devices()[0].device_kind.lower()
    except Exception:
        pass
    vmem_cap = (64 << 20) if "v7" in kind else (128 << 20)
    # v4 / v5p megacore and v7x expose 2 TensorCores per device; v5e/v6e: 1.
    two_core = any(tag in kind for tag in ("v4", "v5p", "v7"))
    return (2 if two_core else 1), vmem_cap


def _pick_batch_tile(B, per_sample_bytes, fixed_bytes, vmem_budget, num_cores):
    """Largest divisor of B that fits the VMEM budget and still leaves one grid
    step per parallel TensorCore (only reserve 2 steps where there ARE 2 TCs)."""
    best = 1
    min_steps = min(num_cores, B)
    for bt in range(1, B + 1):
        if B % bt:
            continue
        if (B // bt) < min_steps:
            continue
        if fixed_bytes + bt * per_sample_bytes <= vmem_budget:
            best = bt
    return best


# ------------------------------------------------------------------
# Fused kernel: ALL GCN layers for one batch tile.
#   a_ref : (BT, N, N)      adjacency, compute dtype (bf16 fast / f32 exact)
#   x_ref : (BT, N, P)      node features at NATURAL width, compute dtype
#   w0/b0 : (F_in, F_mid)   first-layer weight (cdt) / (1, F_mid) bias (f32)
#   wm/bm : (Lm, F_mid, F_mid) middle stack (cdt) / (Lm, 1, F_mid) biases (f32)
#   wl/bl : (F_mid, F_out)  last-layer weight (cdt) / (1, F_out) bias (f32)
#   o_ref : (BT, N, F_out)  padded output, compute dtype, lane-dense stores
#   xpad_ref: VMEM (BT*N, F_in) cdt   — in-kernel lane padding of X
#   acc_ref : VMEM (BT*N, F_acc) f32  — A@Z products (replaces concatenate)
# Zero padding is self-consistent: padded W rows/cols and padded b lanes are
# zero, so padded activation lanes remain exactly zero through every layer.
# ------------------------------------------------------------------
def _gcn_fused_kernel(a_ref, x_ref, w0_ref, b0_ref, wm_ref, bm_ref, wl_ref,
                      bl_ref, o_ref, xpad_ref, acc_ref, *, n_mid):
    f32 = jnp.float32
    cdt = x_ref.dtype
    BT, N, P = x_ref.shape
    F_in = xpad_ref.shape[-1]
    F_mid = w0_ref.shape[-1]
    F_out = wl_ref.shape[-1]

    def a_matmul(z_c, w):
        # block-diag(A) @ z: per-batch 2-D MXU matmuls (bf16 in / f32 acc),
        # written straight into the VMEM scratch at static 8-aligned row
        # offsets — no concatenate copies, a_ref[bb] loaded lazily.
        for bb in range(BT):
            acc_ref[bb * N:(bb + 1) * N, :w] = jnp.dot(
                a_ref[bb], z_c[bb * N:(bb + 1) * N, :],
                preferred_element_type=f32)
        return acc_ref[:, :w]

    def layer(h_c, w_c, b_row, in_w, out_w, do_relu):
        if out_w < in_w:   # shrinking layer: X@W first keeps the N^2 product narrow
            z = jnp.dot(h_c, w_c, preferred_element_type=f32).astype(cdt)
            y = a_matmul(z, out_w)
        else:              # widening/equal layer: A@X first
            y = jnp.dot(a_matmul(h_c, in_w).astype(cdt), w_c,
                        preferred_element_type=f32)
        y = y + b_row                       # (BT*N, out_w) f32 + (1, out_w) f32
        if do_relu:
            y = jnp.maximum(y, 0.0)
        return y                            # f32

    # ---- pad node features to F_in lanes inside VMEM (unconditionally: the
    #      scratch is per-core persistent, so every step must see zero pad) ----
    xpad_ref[...] = jnp.zeros_like(xpad_ref)
    xpad_ref[:, :P] = x_ref[...].reshape(BT * N, P)

    # ---- first layer (peeled): F_in -> F_mid, ReLU ----
    h_c = layer(xpad_ref[...], w0_ref[...], b0_ref[...],
                F_in, F_mid, True).astype(cdt)

    # ---- homogeneous middle layers: F_mid -> F_mid, ReLU.
    #      fori_loop + dynamic weight indexing bounds live ranges to one layer.
    if n_mid > 0:
        def mid_body(l, hc):
            return layer(hc, wm_ref[l], bm_ref[l], F_mid, F_mid, True).astype(cdt)
        h_c = lax.fori_loop(0, n_mid, mid_body, h_c, unroll=(n_mid <= 2))

    # ---- last layer (peeled): F_mid -> F_out, identity, lane-dense store ----
    y = layer(h_c, wl_ref[...], bl_ref[...], F_mid, F_out, False)
    o_ref[...] = y.reshape(BT, N, F_out).astype(o_ref.dtype)


def gcn_forward(A, X, W0, b0, Wm, bm, Wl, bl, *, n_mid, n_out,
                input_dtype=jnp.bfloat16, batch_tile=None, return_padded=False):
    """Full fused GCN forward via one pallas_call."""
    B, N, _ = A.shape
    P = X.shape[-1]
    F_in, F_mid = W0.shape
    F_out = Wl.shape[-1]
    F_acc = max(F_in, F_mid, F_out)

    cdt = jnp.dtype(input_dtype)      # MXU operand dtype (bf16 fast / f32 exact)
    out_dtype = cdt                   # bf16 output halves HBM writeback
    csz = cdt.itemsize

    # Only a dtype cast at the boundary — no padded host-side copies per call.
    A_in = A.astype(cdt)
    X_in = X.astype(cdt)
    W0c, Wmc, Wlc = W0.astype(cdt), Wm.astype(cdt), Wl.astype(cdt)

    # ---- generation-aware batch tile + explicit VMEM budget ----
    num_cores, vmem_cap = _tpu_generation()
    w_bytes = (W0c.size + Wmc.size + Wlc.size) * csz
    b_bytes = (b0.size + bm.size + bl.size) * 4
    fixed = 2 * (w_bytes + b_bytes)                       # double-buffered residents
    per_sample = (2 * N * (N + P) * csz                   # A + X blocks, double-buffered
                  + 2 * N * F_out * csz                   # out block, double-buffered
                  + N * F_in * csz + N * F_acc * 4        # xpad + acc scratch
                  + 4 * N * F_acc * 4)                    # headroom for live f32 temps
    if batch_tile is None:
        BT = _pick_batch_tile(B, per_sample, fixed, int(0.6 * vmem_cap), num_cores)
    else:
        BT = batch_tile
    assert B % BT == 0, "batch_tile must divide batch"
    vmem_limit = int(min(int(0.9 * vmem_cap),
                         max(32 << 20, 2 * (fixed + BT * per_sample))))

    # ---- cost hint ----
    layer_dims = [(F_in, F_mid)] + [(F_mid, F_mid)] * n_mid + [(F_mid, F_out)]
    flops = 0
    for iw, ow in layer_dims:
        aw = ow if ow < iw else iw                        # A-product width
        flops += 2 * B * N * N * aw + 2 * B * N * iw * ow
    bytes_accessed = int((A_in.size + X_in.size) * csz + w_bytes + b_bytes
                         + B * N * F_out * csz)

    kernel = functools.partial(_gcn_fused_kernel, n_mid=n_mid)

    out = pl.pallas_call(
        kernel,
        out_shape=jax.ShapeDtypeStruct((B, N, F_out), out_dtype),
        grid=(B // BT,),
        in_specs=[
            pl.BlockSpec((BT, N, N), lambda i: (i, 0, 0)),      # A   per batch tile
            pl.BlockSpec((BT, N, P), lambda i: (i, 0, 0)),      # X   per batch tile
            pl.BlockSpec((F_in, F_mid), lambda i: (0, 0)),      # W first  (resident)
            pl.BlockSpec((1, F_mid), lambda i: (0, 0)),         # b first
            pl.BlockSpec(Wm.shape, lambda i: (0, 0, 0)),        # W middle stack
            pl.BlockSpec(bm.shape, lambda i: (0, 0, 0)),        # b middle stack
            pl.BlockSpec((F_mid, F_out), lambda i: (0, 0)),     # W last
            pl.BlockSpec((1, F_out), lambda i: (0, 0)),         # b last
        ],
        out_specs=pl.BlockSpec((BT, N, F_out), lambda i: (i, 0, 0)),
        scratch_shapes=[
            pltpu.VMEM((BT * N, F_in), cdt),                    # padded layer-0 input
            pltpu.VMEM((BT * N, F_acc), jnp.float32),           # A@Z accumulator
        ],
        compiler_params=pltpu.CompilerParams(
            dimension_semantics=("parallel",),
            vmem_limit_bytes=vmem_limit),
        cost_estimate=pl.CostEstimate(flops=flops, transcendentals=0,
                                      bytes_accessed=bytes_accessed),
    )(A_in, X_in, W0c, b0, Wmc, bm, Wlc, bl)

    if return_padded:
        return out
    return out[:, :, :n_out]          # strip lane padding back to n_par


# ------------------------------------------------------------------
# Deterministic parameter init mirroring the PyTorch module
#   W: xavier_uniform with gain = calculate_gain('relu') = sqrt(2);  b: zeros
# ------------------------------------------------------------------
def _xavier_uniform(key, n_left, n_right, gain):
    bound = gain * math.sqrt(6.0 / (n_left + n_right))
    return jax.random.uniform(key, (n_left, n_right), jnp.float32,
                              minval=-bound, maxval=bound)


class GCNPallas:
    """JAX/Pallas port of the PyTorch GCN forward pass (batch_norm=False)."""
    # TODO(synk): batch_norm=True (nn.BatchNorm1d over nodes) is not implemented.

    def __init__(self, key, n_nodes: int, n_par: int, list_hidden=(50, 50)):
        list_hidden = list(list_hidden)
        if len(list_hidden) == 0:
            raise NotImplementedError("GCNPallas requires >= 1 hidden layer")
        gain = math.sqrt(2.0)                  # nn.init.calculate_gain('relu')

        dims = []
        for i, n_hidden in enumerate(list_hidden):
            n_left = n_par if i == 0 else list_hidden[i - 1]
            dims.append((n_left, n_hidden))
        dims.append((list_hidden[-1], n_par))

        params = []
        for (n_left, n_right) in dims:
            key, wk = jax.random.split(key)
            W = _xavier_uniform(wk, n_left, n_right, gain)
            b = jnp.zeros((n_right,), jnp.float32)
            params.append((W, b))

        self.params = params                   # unpadded, PyTorch-shaped
        self.dims = dims
        self.relu = tuple([True] * len(list_hidden) + [False])
        self.n_par = n_par
        self.n_mid = len(dims) - 2

        # Per-layer pad widths: first (F_in->F_mid), middle (F_mid->F_mid),
        # last (F_mid->F_out). Padding done ONCE here, not per call.
        F_in = _round_up(n_par, LANE)
        F_mid = _round_up(max(list_hidden), LANE)
        F_out = _round_up(n_par, LANE)
        self.F_in, self.F_mid, self.F_out = F_in, F_mid, F_out

        (W0, b0), (nl0, nr0) = params[0], dims[0]
        self.W0 = jnp.zeros((F_in, F_mid), jnp.float32).at[:nl0, :nr0].set(W0)
        self.b0 = jnp.zeros((1, F_mid), jnp.float32).at[0, :nr0].set(b0)

        n_mid_eff = max(self.n_mid, 1)         # keep a (1,F,F) dummy when L==2
        Wm = jnp.zeros((n_mid_eff, F_mid, F_mid), jnp.float32)
        bm = jnp.zeros((n_mid_eff, 1, F_mid), jnp.float32)
        for l in range(self.n_mid):
            (W, b), (nl, nr) = params[1 + l], dims[1 + l]
            Wm = Wm.at[l, :nl, :nr].set(W)
            bm = bm.at[l, 0, :nr].set(b)
        self.Wm, self.bm = Wm, bm

        (Wl, bl), (nll, nrl) = params[-1], dims[-1]
        self.Wl = jnp.zeros((F_mid, F_out), jnp.float32).at[:nll, :nrl].set(Wl)
        self.bl = jnp.zeros((1, F_out), jnp.float32).at[0, :nrl].set(bl)

    def __call__(self, A, X, input_dtype=jnp.bfloat16, batch_tile=None,
                 return_padded=False):
        return gcn_forward(A, X, self.W0, self.b0, self.Wm, self.bm,
                           self.Wl, self.bl,
                           n_mid=self.n_mid, n_out=self.n_par,
                           input_dtype=input_dtype, batch_tile=batch_tile,
                           return_padded=return_padded)


# Pure-JAX f32 reference of the PyTorch forward.
def _reference_forward(A, X, params, relu_flags):
    A = A.astype(jnp.float32)
    X = X.astype(jnp.float32)
    for (W, b), r in zip(params, relu_flags):
        X = A @ X @ W + b
        if r:
            X = jnp.maximum(X, 0.0)
    return X


def _max_rel_err(a, b):
    a = jnp.asarray(a, jnp.float32)
    b = jnp.asarray(b, jnp.float32)
    return float(jnp.max(jnp.abs(a - b)) / (jnp.max(jnp.abs(b)) + 1e-8))


if __name__ == "__main__":
    key = jax.random.PRNGKey(0)
    k_model, k_a, k_x = jax.random.split(key, 3)

    # Small shapes consistent with the module: batch=2, n_nodes=16, n_par=8
    B, N, P = 2, 16, 8
    list_hidden = [32, 32]

    model = GCNPallas(k_model, n_nodes=N, n_par=P, list_hidden=list_hidden)

    A_raw = jax.random.uniform(k_a, (B, N, N), jnp.float32)
    A = 0.5 * (A_raw + jnp.swapaxes(A_raw, -1, -2))    # symmetric-ish adjacency
    X = jax.random.normal(k_x, (B, N, P), jnp.float32)

    ref_f32 = _reference_forward(A, X, model.params, model.relu)

    # 1) exact-semantics path: f32 operands end-to-end, tight tolerance.
    out_f32 = jax.block_until_ready(model(A, X, input_dtype=jnp.float32))
    assert out_f32.shape == (B, N, P), out_f32.shape
    err = _max_rel_err(out_f32, ref_f32)
    assert err < 2e-3, f"f32 path mismatch: rel err {err}"

    # 2) default fast path: bf16 A/X/W straight into the MXU, f32 accumulation,
    #    bf16 output — compared (loosely) against the exact f32 reference.
    out_bf16 = jax.block_until_ready(model(A, X))
    assert out_bf16.shape == (B, N, P), out_bf16.shape
    err = _max_rel_err(out_bf16, ref_f32)
    assert err < 8e-2, f"bf16 path mismatch: rel err {err}"

    # 3) larger batch exercises batch tiling (>=2 grid steps on 2-TC parts,
    #    single big fold on 1-TC parts).
    k_a2, k_x2 = jax.random.split(k_a)
    A4_raw = jax.random.uniform(k_a2, (4, N, N), jnp.float32)
    A4 = 0.5 * (A4_raw + jnp.swapaxes(A4_raw, -1, -2))
    X4 = jax.random.normal(k_x2, (4, N, P), jnp.float32)
    out4 = jax.block_until_ready(model(A4, X4))
    ref4 = _reference_forward(A4, X4, model.params, model.relu)
    assert out4.shape == (4, N, P), out4.shape
    err = _max_rel_err(out4, ref4)
    assert err < 8e-2, f"batched path mismatch: rel err {err}"

    print("KERNEL_OK")
</pallas_src>

<mosaic_0001>
module attributes {stable_mosaic.version = 11 : i64} {
  func.func @_gcn_fused_kernel(%arg0: i32, %arg1: memref<2x16x16xf32, #tpu.memory_space<vmem>>, %arg2: memref<2x16x8xf32, #tpu.memory_space<vmem>>, %arg3: memref<128x128xf32, #tpu.memory_space<vmem>>, %arg4: memref<1x128xf32, #tpu.memory_space<vmem>>, %arg5: memref<1x128x128xf32, #tpu.memory_space<vmem>>, %arg6: memref<1x1x128xf32, #tpu.memory_space<vmem>>, %arg7: memref<128x128xf32, #tpu.memory_space<vmem>>, %arg8: memref<1x128xf32, #tpu.memory_space<vmem>>, %arg9: memref<2x16x128xf32, #tpu.memory_space<vmem>>, %arg10: memref<32x128xf32, #tpu.memory_space<vmem>>, %arg11: memref<32x128xf32, #tpu.memory_space<vmem>>) attributes {dimension_semantics = [#tpu.dimension_semantics<parallel>], iteration_bounds = array<i64: 1>, scalar_prefetch = 0 : i64, scratch_operands = 2 : i64, tpu.core_type = #tpu.core_type<tc>, window_params = [{transform_indices = @transform_0, window_bounds = array<i64: 2, 16, 16>}, {transform_indices = @transform_1, window_bounds = array<i64: 2, 16, 8>}, {pipeline_mode = #tpu.pipeline_mode<synchronous>, transform_indices = @transform_2, window_bounds = array<i64: 128, 128>}, {pipeline_mode = #tpu.pipeline_mode<synchronous>, transform_indices = @transform_3, window_bounds = array<i64: 1, 128>}, {pipeline_mode = #tpu.pipeline_mode<synchronous>, transform_indices = @transform_4, window_bounds = array<i64: 1, 128, 128>}, {pipeline_mode = #tpu.pipeline_mode<synchronous>, transform_indices = @transform_5, window_bounds = array<i64: 1, 1, 128>}, {pipeline_mode = #tpu.pipeline_mode<synchronous>, transform_indices = @transform_6, window_bounds = array<i64: 128, 128>}, {pipeline_mode = #tpu.pipeline_mode<synchronous>, transform_indices = @transform_7, window_bounds = array<i64: 1, 128>}, {transform_indices = @transform_8, window_bounds = array<i64: 2, 16, 128>}]} {
    %cst = arith.constant 0.000000e+00 : f32
    %0 = vector.broadcast %cst : f32 to vector<32x128xf32>
    %c0 = arith.constant 0 : index
    %c0_0 = arith.constant 0 : index
    %1 = vector.load %arg10[%c0, %c0_0] : memref<32x128xf32, #tpu.memory_space<vmem>>, vector<32x128xf32>
    tpu.vector_store %arg10[%c0, %c0_0], %0 {strides = array<i32>} : memref<32x128xf32, #tpu.memory_space<vmem>>, vector<32x128xf32>,
    %c0_1 = arith.constant 0 : index
    %c0_2 = arith.constant 0 : index
    %c0_3 = arith.constant 0 : index
    %2 = vector.load %arg2[%c0_1, %c0_2, %c0_3] : memref<2x16x8xf32, #tpu.memory_space<vmem>>, vector<2x16x8xf32>
    %3 = vector.shape_cast %2 : vector<2x16x8xf32> to vector<32x8xf32>
    %c0_4 = arith.constant 0 : index
    %c0_5 = arith.constant 0 : index
    %4 = vector.load %arg10[%c0_4, %c0_5] : memref<32x128xf32, #tpu.memory_space<vmem>>, vector<32x8xf32>
    tpu.vector_store %arg10[%c0_4, %c0_5], %3 {strides = array<i32>} : memref<32x128xf32, #tpu.memory_space<vmem>>, vector<32x8xf32>,
    %c0_6 = arith.constant 0 : index
    %c0_7 = arith.constant 0 : index
    %5 = vector.load %arg10[%c0_6, %c0_7] : memref<32x128xf32, #tpu.memory_space<vmem>>, vector<32x128xf32>
    %c0_8 = arith.constant 0 : index
    %c0_9 = arith.constant 0 : index
    %6 = vector.load %arg3[%c0_8, %c0_9] : memref<128x128xf32, #tpu.memory_space<vmem>>, vector<128x128xf32>
    %c0_10 = arith.constant 0 : index
    %c0_11 = arith.constant 0 : index
    %7 = vector.load %arg4[%c0_10, %c0_11] : memref<1x128xf32, #tpu.memory_space<vmem>>, vector<1x128xf32>
    %c0_12 = arith.constant 0 : index
    %c0_13 = arith.constant 0 : index
    %c0_14 = arith.constant 0 : index
    %8 = vector.load %arg1[%c0_12, %c0_13, %c0_14] : memref<2x16x16xf32, #tpu.memory_space<vmem>>, vector<1x16x16xf32>
    %9 = vector.shape_cast %8 : vector<1x16x16xf32> to vector<16x16xf32>
    %10 = vector.extract_strided_slice %5 {offsets = [0, 0], sizes = [16, 128], strides = [1, 1]} : vector<32x128xf32> to vector<16x128xf32>
    %cst_15 = arith.constant dense<0.000000e+00> : vector<16x128xf32>
    %11 = tpu.matmul %9, %10, %cst_15 {dimension_numbers = #tpu.dot_dimension_numbers<[1], [0], [0], [1], [0, 0, 1, 1], [], []>} : vector<16x16xf32>, vector<16x128xf32>, vector<16x128xf32> -> vector<16x128xf32>
    %c0_16 = arith.constant 0 : index
    %c0_17 = arith.constant 0 : index
    %12 = vector.load %arg11[%c0_16, %c0_17] : memref<32x128xf32, #tpu.memory_space<vmem>>, vector<16x128xf32>
    tpu.vector_store %arg11[%c0_16, %c0_17], %11 {strides = array<i32>} : memref<32x128xf32, #tpu.memory_space<vmem>>, vector<16x128xf32>,
    %c1 = arith.constant 1 : index
    %c0_18 = arith.constant 0 : index
    %c0_19 = arith.constant 0 : index
    %13 = vector.load %arg1[%c1, %c0_18, %c0_19] : memref<2x16x16xf32, #tpu.memory_space<vmem>>, vector<1x16x16xf32>
    %14 = vector.shape_cast %13 : vector<1x16x16xf32> to vector<16x16xf32>
    %15 = vector.extract_strided_slice %5 {offsets = [16, 0], sizes = [16, 128], strides = [1, 1]} : vector<32x128xf32> to vector<16x128xf32>
    %cst_20 = arith.constant dense<0.000000e+00> : vector<16x128xf32>
    %16 = tpu.matmul %14, %15, %cst_20 {dimension_numbers = #tpu.dot_dimension_numbers<[1], [0], [0], [1], [0, 0, 1, 1], [], []>} : vector<16x16xf32>, vector<16x128xf32>, vector<16x128xf32> -> vector<16x128xf32>
    %c16 = arith.constant 16 : index
    %c0_21 = arith.constant 0 : index
    %17 = vector.load %arg11[%c16, %c0_21] : memref<32x128xf32, #tpu.memory_space<vmem>>, vector<16x128xf32>
    tpu.vector_store %arg11[%c16, %c0_21], %16 {strides = array<i32>} : memref<32x128xf32, #tpu.memory_space<vmem>>, vector<16x128xf32>,
    %c0_22 = arith.constant 0 : index
    %c0_23 = arith.constant 0 : index
    %18 = vector.load %arg11[%c0_22, %c0_23] : memref<32x128xf32, #tpu.memory_space<vmem>>, vector<32x128xf32>
    %cst_24 = arith.constant dense<0.000000e+00> : vector<32x128xf32>
    %19 = tpu.matmul %18, %6, %cst_24 {dimension_numbers = #tpu.dot_dimension_numbers<[1], [0], [0], [1], [0, 0, 1, 1], [], []>} : vector<32x128xf32>, vector<128x128xf32>, vector<32x128xf32> -> vector<32x128xf32>
    %20 = vector.broadcast %7 : vector<1x128xf32> to vector<32x128xf32>
    %21 = arith.addf %19, %20 : vector<32x128xf32>
    %cst_25 = arith.constant 0.000000e+00 : f32
    %22 = vector.broadcast %cst_25 : f32 to vector<32x128xf32>
    %23 = arith.maximumf %21, %22 : vector<32x128xf32>
    %c0_i32 = arith.constant 0 : i32
    %24 = arith.index_cast %c0_i32 : i32 to index
    %c0_26 = arith.constant 0 : index
    %c0_27 = arith.constant 0 : index
    %25 = vector.load %arg5[%24, %c0_26, %c0_27] : memref<1x128x128xf32, #tpu.memory_space<vmem>>, vector<1x128x128xf32>
    %26 = vector.shape_cast %25 : vector<1x128x128xf32> to vector<128x128xf32>
    %27 = arith.index_cast %c0_i32 : i32 to index
    %c0_28 = arith.constant 0 : index
    %c0_29 = arith.constant 0 : index
    %28 = vector.load %arg6[%27, %c0_28, %c0_29] : memref<1x1x128xf32, #tpu.memory_space<vmem>>, vector<1x1x128xf32>
    %29 = vector.shape_cast %28 : vector<1x1x128xf32> to vector<1x128xf32>
    %c0_30 = arith.constant 0 : index
    %c0_31 = arith.constant 0 : index
    %c0_32 = arith.constant 0 : index
    %30 = vector.load %arg1[%c0_30, %c0_31, %c0_32] : memref<2x16x16xf32, #tpu.memory_space<vmem>>, vector<1x16x16xf32>
    %31 = vector.shape_cast %30 : vector<1x16x16xf32> to vector<16x16xf32>
    %32 = vector.extract_strided_slice %23 {offsets = [0, 0], sizes = [16, 128], strides = [1, 1]} : vector<32x128xf32> to vector<16x128xf32>
    %cst_33 = arith.constant dense<0.000000e+00> : vector<16x128xf32>
    %33 = tpu.matmul %31, %32, %cst_33 {dimension_numbers = #tpu.dot_dimension_numbers<[1], [0], [0], [1], [0, 0, 1, 1], [], []>} : vector<16x16xf32>, vector<16x128xf32>, vector<16x128xf32> -> vector<16x128xf32>
    %c0_34 = arith.constant 0 : index
    %c0_35 = arith.constant 0 : index
    %34 = vector.load %arg11[%c0_34, %c0_35] : memref<32x128xf32, #tpu.memory_space<vmem>>, vector<16x128xf32>
    tpu.vector_store %arg11[%c0_34, %c0_35], %33 {strides = array<i32>} : memref<32x128xf32, #tpu.memory_space<vmem>>, vector<16x128xf32>,
    %c1_36 = arith.constant 1 : index
    %c0_37 = arith.constant 0 : index
    %c0_38 = arith.constant 0 : index
    %35 = vector.load %arg1[%c1_36, %c0_37, %c0_38] : memref<2x16x16xf32, #tpu.memory_space<vmem>>, vector<1x16x16xf32>
    %36 = vector.shape_cast %35 : vector<1x16x16xf32> to vector<16x16xf32>
    %37 = vector.extract_strided_slice %23 {offsets = [16, 0], sizes = [16, 128], strides = [1, 1]} : vector<32x128xf32> to vector<16x128xf32>
    %cst_39 = arith.constant dense<0.000000e+00> : vector<16x128xf32>
    %38 = tpu.matmul %36, %37, %cst_39 {dimension_numbers = #tpu.dot_dimension_numbers<[1], [0], [0], [1], [0, 0, 1, 1], [], []>} : vector<16x16xf32>, vector<16x128xf32>, vector<16x128xf32> -> vector<16x128xf32>
    %c16_40 = arith.constant 16 : index
    %c0_41 = arith.constant 0 : index
    %39 = vector.load %arg11[%c16_40, %c0_41] : memref<32x128xf32, #tpu.memory_space<vmem>>, vector<16x128xf32>
    tpu.vector_store %arg11[%c16_40, %c0_41], %38 {strides = array<i32>} : memref<32x128xf32, #tpu.memory_space<vmem>>, vector<16x128xf32>,
    %c0_42 = arith.constant 0 : index
    %c0_43 = arith.constant 0 : index
    %40 = vector.load %arg11[%c0_42, %c0_43] : memref<32x128xf32, #tpu.memory_space<vmem>>, vector<32x128xf32>
    %cst_44 = arith.constant dense<0.000000e+00> : vector<32x128xf32>
    %41 = tpu.matmul %40, %26, %cst_44 {dimension_numbers = #tpu.dot_dimension_numbers<[1], [0], [0], [1], [0, 0, 1, 1], [], []>} : vector<32x128xf32>, vector<128x128xf32>, vector<32x128xf32> -> vector<32x128xf32>
    %42 = vector.broadcast %29 : vector<1x128xf32> to vector<32x128xf32>
    %43 = arith.addf %41, %42 : vector<32x128xf32>
    %cst_45 = arith.constant 0.000000e+00 : f32
    %44 = vector.broadcast %cst_45 : f32 to vector<32x128xf32>
    %45 = arith.maximumf %43, %44 : vector<32x128xf32>
    %c1_i32 = arith.constant 1 : i32
    %c0_46 = arith.constant 0 : index
    %c0_47 = arith.constant 0 : index
    %46 = vector.load %arg7[%c0_46, %c0_47] : memref<128x128xf32, #tpu.memory_space<vmem>>, vector<128x128xf32>
    %c0_48 = arith.constant 0 : index
    %c0_49 = arith.constant 0 : index
    %47 = vector.load %arg8[%c0_48, %c0_49] : memref<1x128xf32, #tpu.memory_space<vmem>>, vector<1x128xf32>
    %c0_50 = arith.constant 0 : index
    %c0_51 = arith.constant 0 : index
    %c0_52 = arith.constant 0 : index
    %48 = vector.load %arg1[%c0_50, %c0_51, %c0_52] : memref<2x16x16xf32, #tpu.memory_space<vmem>>, vector<1x16x16xf32>
    %49 = vector.shape_cast %48 : vector<1x16x16xf32> to vector<16x16xf32>
    %50 = vector.extract_strided_slice %45 {offsets = [0, 0], sizes = [16, 128], strides = [1, 1]} : vector<32x128xf32> to vector<16x128xf32>
    %cst_53 = arith.constant dense<0.000000e+00> : vector<16x128xf32>
    %51 = tpu.matmul %49, %50, %cst_53 {dimension_numbers = #tpu.dot_dimension_numbers<[1], [0], [0], [1], [0, 0, 1, 1], [], []>} : vector<16x16xf32>, vector<16x128xf32>, vector<16x128xf32> -> vector<16x128xf32>
    %c0_54 = arith.constant 0 : index
    %c0_55 = arith.constant 0 : index
    %52 = vector.load %arg11[%c0_54, %c0_55] : memref<32x128xf32, #tpu.memory_space<vmem>>, vector<16x128xf32>
    tpu.vector_store %arg11[%c0_54, %c0_55], %51 {strides = array<i32>} : memref<32x128xf32, #tpu.memory_space<vmem>>, vector<16x128xf32>,
    %c1_56 = arith.constant 1 : index
    %c0_57 = arith.constant 0 : index
    %c0_58 = arith.constant 0 : index
    %53 = vector.load %arg1[%c1_56, %c0_57, %c0_58] : memref<2x16x16xf32, #tpu.memory_space<vmem>>, vector<1x16x16xf32>
    %54 = vector.shape_cast %53 : vector<1x16x16xf32> to vector<16x16xf32>
    %55 = vector.extract_strided_slice %45 {offsets = [16, 0], sizes = [16, 128], strides = [1, 1]} : vector<32x128xf32> to vector<16x128xf32>
    %cst_59 = arith.constant dense<0.000000e+00> : vector<16x128xf32>
    %56 = tpu.matmul %54, %55, %cst_59 {dimension_numbers = #tpu.dot_dimension_numbers<[1], [0], [0], [1], [0, 0, 1, 1], [], []>} : vector<16x16xf32>, vector<16x128xf32>, vector<16x128xf32> -> vector<16x128xf32>
    %c16_60 = arith.constant 16 : index
    %c0_61 = arith.constant 0 : index
    %57 = vector.load %arg11[%c16_60, %c0_61] : memref<32x128xf32, #tpu.memory_space<vmem>>, vector<16x128xf32>
    tpu.vector_store %arg11[%c16_60, %c0_61], %56 {strides = array<i32>} : memref<32x128xf32, #tpu.memory_space<vmem>>, vector<16x128xf32>,
    %c0_62 = arith.constant 0 : index
    %c0_63 = arith.constant 0 : index
    %58 = vector.load %arg11[%c0_62, %c0_63] : memref<32x128xf32, #tpu.memory_space<vmem>>, vector<32x128xf32>
    %cst_64 = arith.constant dense<0.000000e+00> : vector<32x128xf32>
    %59 = tpu.matmul %58, %46, %cst_64 {dimension_numbers = #tpu.dot_dimension_numbers<[1], [0], [0], [1], [0, 0, 1, 1], [], []>} : vector<32x128xf32>, vector<128x128xf32>, vector<32x128xf32> -> vector<32x128xf32>
    %60 = vector.broadcast %47 : vector<1x128xf32> to vector<32x128xf32>
    %61 = arith.addf %59, %60 : vector<32x128xf32>
    %62 = vector.shape_cast %61 : vector<32x128xf32> to vector<2x16x128xf32>
    %c0_65 = arith.constant 0 : index
    %c0_66 = arith.constant 0 : index
    %c0_67 = arith.constant 0 : index
    %63 = vector.load %arg9[%c0_65, %c0_66, %c0_67] : memref<2x16x128xf32, #tpu.memory_space<vmem>>, vector<2x16x128xf32>
    tpu.vector_store %arg9[%c0_65, %c0_66, %c0_67], %62 {strides = array<i32>} : memref<2x16x128xf32, #tpu.memory_space<vmem>>, vector<2x16x128xf32>,
    return
  }
  func.func @transform_0(%arg0: i32) -> (i32, i32, i32) {
    %c0_i32 = arith.constant 0 : i32
    %c0_i32_0 = arith.constant 0 : i32
    %c0_i32_1 = arith.constant 0 : i32
    return %arg0, %c0_i32, %c0_i32_0 : i32, i32, i32
  }
  func.func @transform_1(%arg0: i32) -> (i32, i32, i32) {
    %c0_i32 = arith.constant 0 : i32
    %c0_i32_0 = arith.constant 0 : i32
    %c0_i32_1 = arith.constant 0 : i32
    return %arg0, %c0_i32, %c0_i32_0 : i32, i32, i32
  }
  func.func @transform_2(%arg0: i32) -> (i32, i32) {
    %c0_i32 = arith.constant 0 : i32
    %c0_i32_0 = arith.constant 0 : i32
    %c0_i32_1 = arith.constant 0 : i32
    return %c0_i32, %c0_i32_0 : i32, i32
  }
  func.func @transform_3(%arg0: i32) -> (i32, i32) {
    %c0_i32 = arith.constant 0 : i32
    %c0_i32_0 = arith.constant 0 : i32
    %c0_i32_1 = arith.constant 0 : i32
    return %c0_i32, %c0_i32_0 : i32, i32
  }
  func.func @transform_4(%arg0: i32) -> (i32, i32, i32) {
    %c0_i32 = arith.constant 0 : i32
    %c0_i32_0 = arith.constant 0 : i32
    %c0_i32_1 = arith.constant 0 : i32
    %c0_i32_2 = arith.constant 0 : i32
    return %c0_i32, %c0_i32_0, %c0_i32_1 : i32, i32, i32
  }
  func.func @transform_5(%arg0: i32) -> (i32, i32, i32) {
    %c0_i32 = arith.constant 0 : i32
    %c0_i32_0 = arith.constant 0 : i32
    %c0_i32_1 = arith.constant 0 : i32
    %c0_i32_2 = arith.constant 0 : i32
    return %c0_i32, %c0_i32_0, %c0_i32_1 : i32, i32, i32
  }
  func.func @transform_6(%arg0: i32) -> (i32, i32) {
    %c0_i32 = arith.constant 0 : i32
    %c0_i32_0 = arith.constant 0 : i32
    %c0_i32_1 = arith.constant 0 : i32
    return %c0_i32, %c0_i32_0 : i32, i32
  }
  func.func @transform_7(%arg0: i32) -> (i32, i32) {
    %c0_i32 = arith.constant 0 : i32
    %c0_i32_0 = arith.constant 0 : i32
    %c0_i32_1 = arith.constant 0 : i32
    return %c0_i32, %c0_i32_0 : i32, i32
  }
  func.func @transform_8(%arg0: i32) -> (i32, i32, i32) {
    %c0_i32 = arith.constant 0 : i32
    %c0_i32_0 = arith.constant 0 : i32
    %c0_i32_1 = arith.constant 0 : i32
    return %arg0, %c0_i32, %c0_i32_0 : i32, i32, i32
  }
}

</mosaic_0001>

<llo_original>
// kernel: tpu_custom_call.1
$region0: #{tpu_custom_call.1}
  #allocation0 [shape = 'u32[]', space=smem, size = 0x4, offset = 0x4, fixed_abs, tag = 'smem constant byte address 0x4 - core index']
  #allocation1 [shape = 'u32[72,128]{1,0:T(1,128)}', space=vmem, size = 0x9000, scoped, tag = 'internal scratch']
  #allocation2 [shape = 'f32[32,128]{1,0:T(8,128)}', space=vmem, size = 0x4000, scoped, tag = 'scratch operand']
  #allocation3 [shape = 'f32[32,128]{1,0:T(8,128)}', space=vmem, size = 0x4000, scoped, tag = 'scratch operand']
  %s0 = inlined_call_operand.vmem [shape: f32[2,16,16], index: 0, kind: input, shape index: {}]
  %s1 = inlined_call_operand.vmem [shape: f32[2,16,8], index: 1, kind: input, shape index: {}]
  %s2 = inlined_call_operand.hbm [shape: f32[128,128], index: 2, kind: input, shape index: {}]
  %s3 = inlined_call_operand.vmem [shape: f32[1,128], index: 3, kind: input, shape index: {}]
  %s4 = inlined_call_operand.hbm [shape: f32[1,128,128], index: 4, kind: input, shape index: {}]
  %s5 = inlined_call_operand.vmem [shape: f32[1,1,128], index: 5, kind: input, shape index: {}]
  %s6 = inlined_call_operand.hbm [shape: f32[128,128], index: 6, kind: input, shape index: {}]
  %s7 = inlined_call_operand.vmem [shape: f32[1,128], index: 7, kind: input, shape index: {}]
  %s8 = inlined_call_operand.hbm [shape: f32[2,16,128], index: 8, kind: output, shape index: {}]
  %s9 = sld [smem:[#allocation0]]
  $region54: #{tpu_custom_call.1} parent=0
    _
  %s11 = ssub.s32 1, %s9
  %s12 = scalar_select 0, %s11, %s9
  $region1: #{tpu_custom_call.1} parent=0
    #allocation4 [shape = 'u8[65536]{0}', space=vmem, size = 0x10000, scoped, tag = 'input window, operand 2, single buffered']
    #allocation5 [shape = 's32[1]{0}', space=sflag, size = 0x4, scoped, tag = 'scoped memory for tpu_custom_call.1']
    #allocation6 [shape = 's32[1]{0}', space=sflag, size = 0x4, scoped, tag = 'scoped memory for tpu_custom_call.1']
    #allocation7 [shape = 'u8[65536]{0}', space=vmem, size = 0x10000, scoped, tag = 'input window, operand 4, single buffered']
    #allocation8 [shape = 's32[1]{0}', space=sflag, size = 0x4, scoped, tag = 'scoped memory for tpu_custom_call.1']
    #allocation9 [shape = 'u8[65536]{0}', space=vmem, size = 0x10000, scoped, tag = 'input window, operand 6, single buffered']
    #allocation10 [shape = 'u8[16384]{0}', space=vmem, size = 0x4000, scoped, tag = 'output window, operand 0, single buffered']
    %13 = vsyncpa [#allocation5], 0
    %14 = vsyncpa [#allocation8], 0
    %15 = vsyncpa [#allocation6], 0
    // Predicated region
    $region2: #{tpu_custom_call.1} parent=1 // pred_check
      _
    $region3: #{tpu_custom_call.1} parent=1 // pred_check_branch
      %17 = sbr.rel (0) target = $region5
    $region4: #{tpu_custom_call.1} parent=1 // pred_region
      _
    $region5: #{tpu_custom_call.1} parent=1 // pred_fallthru
      _
    // Predicated region
    $region6: #{tpu_custom_call.1} parent=1 // pred_check
      _
    $region7: #{tpu_custom_call.1} parent=1 // pred_check_branch
      %19 = sbr.rel (0) target = $region9
    $region8: #{tpu_custom_call.1} parent=1 // pred_region
      _
    $region9: #{tpu_custom_call.1} parent=1 // pred_fallthru
      _
    // Predicated region
    $region10: #{tpu_custom_call.1} parent=1 // pred_check
      _
    $region11: #{tpu_custom_call.1} parent=1 // pred_check_branch
      %21 = sbr.rel (0) target = $region13
    $region12: #{tpu_custom_call.1} parent=1 // pred_region
      %23 = vsyncadd [#allocation5], 0
      %s24 = sshll.u32 %s2, 4
      %s25 = int_to_ptr.hbm [resolvable:$true] %s24
      %s26 = sshll.u32 [#allocation4], 4
      %s27 = int_to_ptr.vmem [resolvable:$true] %s26
      %32 = dma.hbm_to_vmem [thread:$0]  %s25, 2048, %s27, [#allocation5], 128, 128, 8
    $region13: #{tpu_custom_call.1} parent=1 // pred_fallthru
      _
    // Predicated region
    $region14: #{tpu_custom_call.1} parent=1 // pred_check
      _
    $region15: #{tpu_custom_call.1} parent=1 // pred_check_branch
      %34 = sbr.rel (0) target = $region17
    $region16: #{tpu_custom_call.1} parent=1 // pred_region
      _
    $region17: #{tpu_custom_call.1} parent=1 // pred_fallthru
      _
    // Predicated region
    $region18: #{tpu_custom_call.1} parent=1 // pred_check
      _
    $region19: #{tpu_custom_call.1} parent=1 // pred_check_branch
      %36 = sbr.rel (0) target = $region21
    $region20: #{tpu_custom_call.1} parent=1 // pred_region
      %38 = vsyncadd [#allocation8], 0
      %s39 = sshll.u32 %s4, 4
      %s40 = int_to_ptr.hbm [resolvable:$true] %s39
      %s41 = sshll.u32 [#allocation7], 4
      %s42 = int_to_ptr.vmem [resolvable:$true] %s41
      %47 = dma.hbm_to_vmem [thread:$0]  %s40, 2048, %s42, [#allocation8], 128, 128, 8
    $region21: #{tpu_custom_call.1} parent=1 // pred_fallthru
      _
    // Predicated region
    $region22: #{tpu_custom_call.1} parent=1 // pred_check
      _
    $region23: #{tpu_custom_call.1} parent=1 // pred_check_branch
      %49 = sbr.rel (0) target = $region25
    $region24: #{tpu_custom_call.1} parent=1 // pred_region
      _
    $region25: #{tpu_custom_call.1} parent=1 // pred_fallthru
      _
    // Predicated region
    $region26: #{tpu_custom_call.1} parent=1 // pred_check
      _
    $region27: #{tpu_custom_call.1} parent=1 // pred_check_branch
      %51 = sbr.rel (0) target = $region29
    $region28: #{tpu_custom_call.1} parent=1 // pred_region
      %53 = vsyncadd [#allocation8], 0
      %s54 = sshll.u32 %s6, 4
      %s55 = int_to_ptr.hbm [resolvable:$true] %s54
      %s56 = sshll.u32 [#allocation9], 4
      %s57 = int_to_ptr.vmem [resolvable:$true] %s56
      %62 = dma.hbm_to_vmem [thread:$0]  %s55, 2048, %s57, [#allocation8], 128, 128, 8
    $region29: #{tpu_custom_call.1} parent=1 // pred_fallthru
      _
    // Predicated region
    $region30: #{tpu_custom_call.1} parent=1 // pred_check
      _
    $region31: #{tpu_custom_call.1} parent=1 // pred_check_branch
      %64 = sbr.rel (0) target = $region33
    $region32: #{tpu_custom_call.1} parent=1 // pred_region
      _
    $region33: #{tpu_custom_call.1} parent=1 // pred_fallthru
      _
    // Predicated region
    $region34: #{tpu_custom_call.1} parent=1 // pred_check
      _
    $region35: #{tpu_custom_call.1} parent=1 // pred_check_branch
      %66 = sbr.rel (0) target = $region37
    $region36: #{tpu_custom_call.1} parent=1 // pred_region
      %68 = dma.done [#allocation5], 2048
    $region37: #{tpu_custom_call.1} parent=1 // pred_fallthru
      _
    // Predicated region
    $region38: #{tpu_custom_call.1} parent=1 // pred_check
      _
    $region39: #{tpu_custom_call.1} parent=1 // pred_check_branch
      %70 = sbr.rel (0) target = $region41
    $region40: #{tpu_custom_call.1} parent=1 // pred_region
      %72 = dma.done [#allocation8], 2048
    $region41: #{tpu_custom_call.1} parent=1 // pred_fallthru
      _
    // Predicated region
    $region42: #{tpu_custom_call.1} parent=1 // pred_check
      _
    $region43: #{tpu_custom_call.1} parent=1 // pred_check_branch
      %74 = sbr.rel (0) target = $region45
    $region44: #{tpu_custom_call.1} parent=1 // pred_region
      %76 = dma.done [#allocation8], 2048
    $region45: #{tpu_custom_call.1} parent=1 // pred_fallthru
      _
    %77 = vst [vmem:[#allocation2] sm:$0xff] 0.0
    %78 = vst [vmem:[#allocation2 + $0x8] sm:$0xff] 0.0
    %79 = vst [vmem:[#allocation2 + $0x10] sm:$0xff] 0.0
    %80 = vst [vmem:[#allocation2 + $0x18] sm:$0xff] 0.0
    %v81 = vld [vmem:[%s1] sm:$0xff]
    %v82 = vld [vmem:[%s1 + $0x8] sm:$0xff]
    %v83 = vld [vmem:[%s1 + $0x10] sm:$0xff]
    %v84 = vld [vmem:[%s1 + $0x18] sm:$0xff]
    %vm85 = vcmask 64512
    %86 = vst.msk [vmem:[#allocation2] sm:$0xff] %vm85, %v81
    %87 = vst.msk [vmem:[#allocation2 + $0x8] sm:$0xff] %vm85, %v82
    %88 = vst.msk [vmem:[#allocation2 + $0x10] sm:$0xff] %vm85, %v83
    %89 = vst.msk [vmem:[#allocation2 + $0x18] sm:$0xff] %vm85, %v84
    %v90 = vld [vmem:[#allocation2] sm:$0xff]
    %v91 = vld [vmem:[#allocation2 + $0x8] sm:$0xff]
    %v92 = vld [vmem:[#allocation2 + $0x10] sm:$0xff]
    %v93 = vld [vmem:[#allocation2 + $0x18] sm:$0xff]
    %v94 = vld [vmem:[#allocation4] sm:$0xff]
    %v95 = vld [vmem:[#allocation4 + $0x8] sm:$0xff]
    %v96 = vld [vmem:[#allocation4 + $0x10] sm:$0xff]
    %v97 = vld [vmem:[#allocation4 + $0x18] sm:$0xff]
    %v98 = vld [vmem:[#allocation4 + $0x20] sm:$0xff]
    %v99 = vld [vmem:[#allocation4 + $0x28] sm:$0xff]
    %v100 = vld [vmem:[#allocation4 + $0x30] sm:$0xff]
    %v101 = vld [vmem:[#allocation4 + $0x38] sm:$0xff]
    %v102 = vld [vmem:[#allocation4 + $0x40] sm:$0xff]
    %v103 = vld [vmem:[#allocation4 + $0x48] sm:$0xff]
    %v104 = vld [vmem:[#allocation4 + $0x50] sm:$0xff]
    %v105 = vld [vmem:[#allocation4 + $0x58] sm:$0xff]
    %v106 = vld [vmem:[#allocation4 + $0x60] sm:$0xff]
    %v107 = vld [vmem:[#allocation4 + $0x68] sm:$0xff]
    %v108 = vld [vmem:[#allocation4 + $0x70] sm:$0xff]
    %v109 = vld [vmem:[#allocation4 + $0x78] sm:$0xff]
    %v110 = vld [vmem:[%s3] sm:$0x1]
    %v111 = vld [vmem:[%s0] sm:$0xff]
    %v112 = vld [vmem:[%s0 + $0x8] sm:$0xff]
    %vm113 = vcmask 130048
    %v115 = vsel %vm113, %v111, 0
    %v118 = vsel %vm113, %v112, 0
    %120 = vmatpush.msra.mxu0 0.0
    %121 = vmatpush.msra.mxu0 0.0
    %122 = vmatpush.msra.mxu0 0.0
    %123 = vmatpush.msra.mxu0 0.0
    %124 = vmatpush.msra.mxu0 0.0
    %125 = vmatpush.msra.mxu0 0.0
    %126 = vmatpush.msra.mxu0 0.0
    %127 = vmatpush.msra.mxu0 0.0
    %128 = vmatpush.msra.mxu0 0.0
    %129 = vmatpush.msra.mxu0 0.0
    %130 = vmatpush.msra.mxu0 0.0
    %131 = vmatpush.msra.mxu0 0.0
    %132 = vmatpush.msra.mxu0 0.0
    %133 = vmatpush.msra.mxu0 0.0
    %134 = vmatpush.msra.mxu0 %v91
    %135 = vmatpush.msra.mxu0 %v90
    %136 = vmatmul.f32.gmra.mxu0 %v115
    %v137 = vpop.f32.mrf.mxu0
    %v138 = vadd.f32 0.0, %v137
    %139 = vmatmul.f32.gmra.mxu0 %v118
    %v140 = vpop.f32.mrf.mxu0
    %v141 = vadd.f32 0.0, %v140
    %142 = vdwg.mxu0
    %143 = vst [vmem:[#allocation3] sm:$0xff] %v138
    %144 = vst [vmem:[#allocation3 + $0x8] sm:$0xff] %v141
    %s145 = scalar_lea.vmem %s0, 16
    %v146 = vld [vmem:[%s145] sm:$0xff]
    %v147 = vld [vmem:[%s145 + $0x8] sm:$0xff]
    %v149 = vsel %vm113, %v146, 0
    %v152 = vsel %vm113, %v147, 0
    %154 = vmatpush.msra.mxu0 0.0
    %155 = vmatpush.msra.mxu0 0.0
    %156 = vmatpush.msra.mxu0 0.0
    %157 = vmatpush.msra.mxu0 0.0
    %158 = vmatpush.msra.mxu0 0.0
    %159 = vmatpush.msra.mxu0 0.0
    %160 = vmatpush.msra.mxu0 0.0
    %161 = vmatpush.msra.mxu0 0.0
    %162 = vmatpush.msra.mxu0 0.0
    %163 = vmatpush.msra.mxu0 0.0
    %164 = vmatpush.msra.mxu0 0.0
    %165 = vmatpush.msra.mxu0 0.0
    %166 = vmatpush.msra.mxu0 0.0
    %167 = vmatpush.msra.mxu0 0.0
    %168 = vmatpush.msra.mxu0 %v93
    %169 = vmatpush.msra.mxu0 %v92
    %170 = vmatmul.f32.gmra.mxu0 %v149
    %v171 = vpop.f32.mrf.mxu0
    %v172 = vadd.f32 0.0, %v171
    %173 = vmatmul.f32.gmra.mxu0 %v152
    %v174 = vpop.f32.mrf.mxu0
    %v175 = vadd.f32 0.0, %v174
    %176 = vdwg.mxu0
    %177 = vst [vmem:[#allocation3 + $0x10] sm:$0xff] %v172
    %178 = vst [vmem:[#allocation3 + $0x18] sm:$0xff] %v175
    %v179 = vld [vmem:[#allocation3] sm:$0xff]
    %v180 = vld [vmem:[#allocation3 + $0x8] sm:$0xff]
    %v181 = vld [vmem:[#allocation3 + $0x10] sm:$0xff]
    %v182 = vld [vmem:[#allocation3 + $0x18] sm:$0xff]
    %v184 = vperm.slane %v110, 0
    %186 = vmatpush.msra.mxu0 %v109
    %187 = vmatpush.msra.mxu0 %v108
    %188 = vmatpush.msra.mxu0 %v107
    %189 = vmatpush.msra.mxu0 %v106
    %190 = vmatpush.msra.mxu0 %v105
    %191 = vmatpush.msra.mxu0 %v104
    %192 = vmatpush.msra.mxu0 %v103
    %193 = vmatpush.msra.mxu0 %v102
    %194 = vmatpush.msra.mxu0 %v101
    %195 = vmatpush.msra.mxu0 %v100
    %196 = vmatpush.msra.mxu0 %v99
    %197 = vmatpush.msra.mxu0 %v98
    %198 = vmatpush.msra.mxu0 %v97
    %199 = vmatpush.msra.mxu0 %v96
    %200 = vmatpush.msra.mxu0 %v95
    %201 = vmatpush.msra.mxu0 %v94
    %202 = vmatmul.f32.gmra.mxu0 %v179
    %v203 = vpop.f32.mrf.mxu0
    %v204 = vadd.f32 %v184, %v203
    %205 = vmatmul.f32.gmra.mxu0 %v180
    %v206 = vpop.f32.mrf.mxu0
    %v207 = vadd.f32 %v184, %v206
    %208 = vmatmul.f32.gmra.mxu0 %v181
    %v209 = vpop.f32.mrf.mxu0
    %v210 = vadd.f32 %v184, %v209
    %211 = vmatmul.f32.gmra.mxu0 %v182
    %v212 = vpop.f32.mrf.mxu0
    %v213 = vadd.f32 %v184, %v212
    %214 = vdwg.mxu0
    %v215 = vmax.f32 %v204, 0.0
    %v216 = vmax.f32 %v207, 0.0
    %v217 = vmax.f32 %v210, 0.0
    %v218 = vmax.f32 %v213, 0.0
    %v219 = vld [vmem:[#allocation7] sm:$0xff]
    %v220 = vld [vmem:[#allocation7 + $0x8] sm:$0xff]
    %v221 = vld [vmem:[#allocation7 + $0x10] sm:$0xff]
    %v222 = vld [vmem:[#allocation7 + $0x18] sm:$0xff]
    %v223 = vld [vmem:[#allocation7 + $0x20] sm:$0xff]
    %v224 = vld [vmem:[#allocation7 + $0x28] sm:$0xff]
    %v225 = vld [vmem:[#allocation7 + $0x30] sm:$0xff]
    %v226 = vld [vmem:[#allocation7 + $0x38] sm:$0xff]
    %v227 = vld [vmem:[#allocation7 + $0x40] sm:$0xff]
    %v228 = vld [vmem:[#allocation7 + $0x48] sm:$0xff]
    %v229 = vld [vmem:[#allocation7 + $0x50] sm:$0xff]
    %v230 = vld [vmem:[#allocation7 + $0x58] sm:$0xff]
    %v231 = vld [vmem:[#allocation7 + $0x60] sm:$0xff]
    %v232 = vld [vmem:[#allocation7 + $0x68] sm:$0xff]
    %v233 = vld [vmem:[#allocation7 + $0x70] sm:$0xff]
    %v234 = vld [vmem:[#allocation7 + $0x78] sm:$0xff]
    %v235 = vld [vmem:[%s5] sm:$0x1]
    %v236 = vld [vmem:[%s0] sm:$0xff]
    %v237 = vld [vmem:[%s0 + $0x8] sm:$0xff]
    %v239 = vsel %vm113, %v236, 0
    %v242 = vsel %vm113, %v237, 0
    %244 = vmatpush.msra.mxu0 0.0
    %245 = vmatpush.msra.mxu0 0.0
    %246 = vmatpush.msra.mxu0 0.0
    %247 = vmatpush.msra.mxu0 0.0
    %248 = vmatpush.msra.mxu0 0.0
    %249 = vmatpush.msra.mxu0 0.0
    %250 = vmatpush.msra.mxu0 0.0
    %251 = vmatpush.msra.mxu0 0.0
    %252 = vmatpush.msra.mxu0 0.0
    %253 = vmatpush.msra.mxu0 0.0
    %254 = vmatpush.msra.mxu0 0.0
    %255 = vmatpush.msra.mxu0 0.0
    %256 = vmatpush.msra.mxu0 0.0
    %257 = vmatpush.msra.mxu0 0.0
    %258 = vmatpush.msra.mxu0 %v216
    %259 = vmatpush.msra.mxu0 %v215
    %260 = vmatmul.f32.gmra.mxu0 %v239
    %v261 = vpop.f32.mrf.mxu0
    %v262 = vadd.f32 0.0, %v261
    %263 = vmatmul.f32.gmra.mxu0 %v242
    %v264 = vpop.f32.mrf.mxu0
    %v265 = vadd.f32 0.0, %v264
    %266 = vdwg.mxu0
    %267 = vst [vmem:[#allocation3] sm:$0xff] %v262
    %268 = vst [vmem:[#allocation3 + $0x8] sm:$0xff] %v265
    %v269 = vld [vmem:[%s145] sm:$0xff]
    %v270 = vld [vmem:[%s145 + $0x8] sm:$0xff]
    %v272 = vsel %vm113, %v269, 0
    %v275 = vsel %vm113, %v270, 0
    %277 = vmatpush.msra.mxu0 0.0
    %278 = vmatpush.msra.mxu0 0.0
    %279 = vmatpush.msra.mxu0 0.0
    %280 = vmatpush.msra.mxu0 0.0
    %281 = vmatpush.msra.mxu0 0.0
    %282 = vmatpush.msra.mxu0 0.0
    %283 = vmatpush.msra.mxu0 0.0
    %284 = vmatpush.msra.mxu0 0.0
    %285 = vmatpush.msra.mxu0 0.0
    %286 = vmatpush.msra.mxu0 0.0
    %287 = vmatpush.msra.mxu0 0.0
    %288 = vmatpush.msra.mxu0 0.0
    %289 = vmatpush.msra.mxu0 0.0
    %290 = vmatpush.msra.mxu0 0.0
    %291 = vmatpush.msra.mxu0 %v218
    %292 = vmatpush.msra.mxu0 %v217
    %293 = vmatmul.f32.gmra.mxu0 %v272
    %v294 = vpop.f32.mrf.mxu0
    %v295 = vadd.f32 0.0, %v294
    %296 = vmatmul.f32.gmra.mxu0 %v275
    %v297 = vpop.f32.mrf.mxu0
    %v298 = vadd.f32 0.0, %v297
    %299 = vdwg.mxu0
    %300 = vst [vmem:[#allocation3 + $0x10] sm:$0xff] %v295
    %301 = vst [vmem:[#allocation3 + $0x18] sm:$0xff] %v298
    %v302 = vld [vmem:[#allocation3] sm:$0xff]
    %v303 = vld [vmem:[#allocation3 + $0x8] sm:$0xff]
    %v304 = vld [vmem:[#allocation3 + $0x10] sm:$0xff]
    %v305 = vld [vmem:[#allocation3 + $0x18] sm:$0xff]
    %v307 = vperm.slane %v235, 0
    %309 = vmatpush.msra.mxu0 %v234
    %310 = vmatpush.msra.mxu0 %v233
    %311 = vmatpush.msra.mxu0 %v232
    %312 = vmatpush.msra.mxu0 %v231
    %313 = vmatpush.msra.mxu0 %v230
    %314 = vmatpush.msra.mxu0 %v229
    %315 = vmatpush.msra.mxu0 %v228
    %316 = vmatpush.msra.mxu0 %v227
    %317 = vmatpush.msra.mxu0 %v226
    %318 = vmatpush.msra.mxu0 %v225
    %319 = vmatpush.msra.mxu0 %v224
    %320 = vmatpush.msra.mxu0 %v223
    %321 = vmatpush.msra.mxu0 %v222
    %322 = vmatpush.msra.mxu0 %v221
    %323 = vmatpush.msra.mxu0 %v220
    %324 = vmatpush.msra.mxu0 %v219
    %325 = vmatmul.f32.gmra.mxu0 %v302
    %v326 = vpop.f32.mrf.mxu0
    %v327 = vadd.f32 %v307, %v326
    %328 = vmatmul.f32.gmra.mxu0 %v303
    %v329 = vpop.f32.mrf.mxu0
    %v330 = vadd.f32 %v307, %v329
    %331 = vmatmul.f32.gmra.mxu0 %v304
    %v332 = vpop.f32.mrf.mxu0
    %v333 = vadd.f32 %v307, %v332
    %334 = vmatmul.f32.gmra.mxu0 %v305
    %v335 = vpop.f32.mrf.mxu0
    %v336 = vadd.f32 %v307, %v335
    %337 = vdwg.mxu0
    %v338 = vmax.f32 %v327, 0.0
    %v339 = vmax.f32 %v330, 0.0
    %v340 = vmax.f32 %v333, 0.0
    %v341 = vmax.f32 %v336, 0.0
    %v342 = vld [vmem:[#allocation9] sm:$0xff]
    %v343 = vld [vmem:[#allocation9 + $0x8] sm:$0xff]
    %v344 = vld [vmem:[#allocation9 + $0x10] sm:$0xff]
    %v345 = vld [vmem:[#allocation9 + $0x18] sm:$0xff]
    %v346 = vld [vmem:[#allocation9 + $0x20] sm:$0xff]
    %v347 = vld [vmem:[#allocation9 + $0x28] sm:$0xff]
    %v348 = vld [vmem:[#allocation9 + $0x30] sm:$0xff]
    %v349 = vld [vmem:[#allocation9 + $0x38] sm:$0xff]
    %v350 = vld [vmem:[#allocation9 + $0x40] sm:$0xff]
    %v351 = vld [vmem:[#allocation9 + $0x48] sm:$0xff]
    %v352 = vld [vmem:[#allocation9 + $0x50] sm:$0xff]
    %v353 = vld [vmem:[#allocation9 + $0x58] sm:$0xff]
    %v354 = vld [vmem:[#allocation9 + $0x60] sm:$0xff]
    %v355 = vld [vmem:[#allocation9 + $0x68] sm:$0xff]
    %v356 = vld [vmem:[#allocation9 + $0x70] sm:$0xff]
    %v357 = vld [vmem:[#allocation9 + $0x78] sm:$0xff]
    %v358 = vld [vmem:[%s7] sm:$0x1]
    %v359 = vld [vmem:[%s0] sm:$0xff]
    %v360 = vld [vmem:[%s0 + $0x8] sm:$0xff]
    %v362 = vsel %vm113, %v359, 0
    %v365 = vsel %vm113, %v360, 0
    %367 = vmatpush.msra.mxu0 0.0
    %368 = vmatpush.msra.mxu0 0.0
    %369 = vmatpush.msra.mxu0 0.0
    %370 = vmatpush.msra.mxu0 0.0
    %371 = vmatpush.msra.mxu0 0.0
    %372 = vmatpush.msra.mxu0 0.0
    %373 = vmatpush.msra.mxu0 0.0
    %374 = vmatpush.msra.mxu0 0.0
    %375 = vmatpush.msra.mxu0 0.0
    %376 = vmatpush.msra.mxu0 0.0
    %377 = vmatpush.msra.mxu0 0.0
    %378 = vmatpush.msra.mxu0 0.0
    %379 = vmatpush.msra.mxu0 0.0
    %380 = vmatpush.msra.mxu0 0.0
    %381 = vmatpush.msra.mxu0 %v339
    %382 = vmatpush.msra.mxu0 %v338
    %383 = vmatmul.f32.gmra.mxu0 %v362
    %v384 = vpop.f32.mrf.mxu0
    %v385 = vadd.f32 0.0, %v384
    %386 = vmatmul.f32.gmra.mxu0 %v365
    %v387 = vpop.f32.mrf.mxu0
    %v388 = vadd.f32 0.0, %v387
    %389 = vdwg.mxu0
    %390 = vst [vmem:[#allocation3] sm:$0xff] %v385
    %391 = vst [vmem:[#allocation3 + $0x8] sm:$0xff] %v388
    %v392 = vld [vmem:[%s145] sm:$0xff]
    %v393 = vld [vmem:[%s145 + $0x8] sm:$0xff]
    %v395 = vsel %vm113, %v392, 0
    %v398 = vsel %vm113, %v393, 0
    %400 = vmatpush.msra.mxu0 0.0
    %401 = vmatpush.msra.mxu0 0.0
    %402 = vmatpush.msra.mxu0 0.0
    %403 = vmatpush.msra.mxu0 0.0
    %404 = vmatpush.msra.mxu0 0.0
    %405 = vmatpush.msra.mxu0 0.0
    %406 = vmatpush.msra.mxu0 0.0
    %407 = vmatpush.msra.mxu0 0.0
    %408 = vmatpush.msra.mxu0 0.0
    %409 = vmatpush.msra.mxu0 0.0
    %410 = vmatpush.msra.mxu0 0.0
    %411 = vmatpush.msra.mxu0 0.0
    %412 = vmatpush.msra.mxu0 0.0
    %413 = vmatpush.msra.mxu0 0.0
    %414 = vmatpush.msra.mxu0 %v341
    %415 = vmatpush.msra.mxu0 %v340
    %416 = vmatmul.f32.gmra.mxu0 %v395
    %v417 = vpop.f32.mrf.mxu0
    %v418 = vadd.f32 0.0, %v417
    %419 = vmatmul.f32.gmra.mxu0 %v398
    %v420 = vpop.f32.mrf.mxu0
    %v421 = vadd.f32 0.0, %v420
    %422 = vdwg.mxu0
    %423 = vst [vmem:[#allocation3 + $0x10] sm:$0xff] %v418
    %424 = vst [vmem:[#allocation3 + $0x18] sm:$0xff] %v421
    %v425 = vld [vmem:[#allocation3] sm:$0xff]
    %v426 = vld [vmem:[#allocation3 + $0x8] sm:$0xff]
    %v427 = vld [vmem:[#allocation3 + $0x10] sm:$0xff]
    %v428 = vld [vmem:[#allocation3 + $0x18] sm:$0xff]
    %v430 = vperm.slane %v358, 0
    %432 = vmatpush.msra.mxu0 %v357
    %433 = vmatpush.msra.mxu0 %v356
    %434 = vmatpush.msra.mxu0 %v355
    %435 = vmatpush.msra.mxu0 %v354
    %436 = vmatpush.msra.mxu0 %v353
    %437 = vmatpush.msra.mxu0 %v352
    %438 = vmatpush.msra.mxu0 %v351
    %439 = vmatpush.msra.mxu0 %v350
    %440 = vmatpush.msra.mxu0 %v349
    %441 = vmatpush.msra.mxu0 %v348
    %442 = vmatpush.msra.mxu0 %v347
    %443 = vmatpush.msra.mxu0 %v346
    %444 = vmatpush.msra.mxu0 %v345
    %445 = vmatpush.msra.mxu0 %v344
    %446 = vmatpush.msra.mxu0 %v343
    %447 = vmatpush.msra.mxu0 %v342
    %448 = vmatmul.f32.gmra.mxu0 %v425
    %v449 = vpop.f32.mrf.mxu0
    %v450 = vadd.f32 %v430, %v449
    %451 = vmatmul.f32.gmra.mxu0 %v426
    %v452 = vpop.f32.mrf.mxu0
    %v453 = vadd.f32 %v430, %v452
    %454 = vmatmul.f32.gmra.mxu0 %v427
    %v455 = vpop.f32.mrf.mxu0
    %v456 = vadd.f32 %v430, %v455
    %457 = vmatmul.f32.gmra.mxu0 %v428
    %v458 = vpop.f32.mrf.mxu0
    %v459 = vadd.f32 %v430, %v458
    %460 = vdwg.mxu0
    %461 = vst [vmem:[#allocation10] sm:$0xff] %v450
    %462 = vst [vmem:[#allocation10 + $0x8] sm:$0xff] %v453
    %463 = vst [vmem:[#allocation10 + $0x10] sm:$0xff] %v456
    %464 = vst [vmem:[#allocation10 + $0x18] sm:$0xff] %v459
    // Predicated region
    $region46: #{tpu_custom_call.1} parent=1 // pred_check
      _
    $region47: #{tpu_custom_call.1} parent=1 // pred_check_branch
      %466 = sbr.rel (0) target = $region49
    $region48: #{tpu_custom_call.1} parent=1 // pred_region
      %468 = vsyncadd [#allocation6], 0
      %s469 = sshll.u32 [#allocation10], 4
      %s470 = int_to_ptr.vmem [resolvable:$true] %s469
      %s471 = sshll.u32 %s8, 4
      %s472 = int_to_ptr.hbm [resolvable:$true] %s471
      %477 = dma.vmem_to_hbm [thread:$0]  %s470, 512, %s472, [#allocation6], 128, 128, 8
    $region49: #{tpu_custom_call.1} parent=1 // pred_fallthru
      _
    // Predicated region
    $region50: #{tpu_custom_call.1} parent=1 // pred_check
      _
    $region51: #{tpu_custom_call.1} parent=1 // pred_check_branch
      %479 = sbr.rel (0) target = $region53
    $region52: #{tpu_custom_call.1} parent=1 // pred_region
      %481 = dma.done [#allocation6], 512
    $region53: #{tpu_custom_call.1} parent=1 // pred_fallthru
      _
    %482 = vsyncpa [#allocation5], 1
    %483 = vsyncpa [#allocation8], 1
    %484 = vsyncpa [#allocation6], 1

</llo_original>
